<compile_context>
chip_gen: v7x
topology: tpu7x:2x2x1
jax: 0.10.0
libtpu: 0.0.40
codegen_flags: <defaults>
</compile_context>

<pallas_src>
import jax
import jax.numpy as jnp
from jax.experimental import pallas as pl
from jax.experimental.pallas import tpu as pltpu

BN_EPS = 1e-5
_LANE = 128
_SUBLANE = 8


def _round_up(x, m):
    return ((x + m - 1) // m) * m


def _vmem_limit_bytes():
    """Scoped-VMEM limit per generation.

    v5e/v6e have 128 MiB physical VMEM -> raise the scoped limit to 64 MiB so
    bigger M-tiles amortize per-grid-step overhead (the biggest measured lever
    for mem-bound kernels).  v7x has only 64 MiB physical -> keep 32 MiB.
    """
    limit = 32 * 1024 * 1024
    try:
        kind = jax.devices()[0].device_kind.lower()
        if "v5" in kind or "v6" in kind:
            limit = 64 * 1024 * 1024
    except Exception:
        pass
    return limit


def _pick_m_tile(M, K, C, vmem_limit):
    """Row-tile for the flattened conv-output axis, sized from the VMEM budget.

    Per grid step (pass 2 is the binding one):
        2*tm*K*2   double-buffered bf16 patch tile
      + 2*tm*C*4   double-buffered f32 output tile
      + 2*K*C*2    bf16 weights (constant index_map, fetched once)
    with ~25% headroom left for compiler scratch.
    """
    budget = (vmem_limit * 3) // 4
    fixed = 2 * K * C * 2
    per_row = 4 * K + 8 * C
    tm = max(_SUBLANE, (budget - fixed) // per_row)
    tm = min(tm, 4096)
    # TODO(synk): for very large K (Cin >= 512) add a K grid axis marked
    # "arbitrary" with an f32 VMEM accumulator instead of shrinking tm.
    tm = max(tm, 256)
    tm = (tm // _SUBLANE) * _SUBLANE
    if M <= tm:
        return _round_up(M, _SUBLANE)
    return tm


def _conv_stats_kernel(p_ref, w_ref, sum_ref, ssq_ref):
    # p_ref:   (tm, K)   bf16 im2col patch tile
    # w_ref:   (K, C)    bf16 conv weights (constant block -> resident)
    # sum_ref: (1, 1, C) f32 per-tile sum            (BN partial stats)
    # ssq_ref: (1, 1, C) f32 per-tile sum of squares
    # NOTE: the conv output is NOT written to HBM here; it is recomputed in
    # pass 2, which removes the f32 y round trip entirely.
    y = jnp.dot(p_ref[...], w_ref[...], preferred_element_type=jnp.float32)
    sum_ref[...] = jnp.sum(y, axis=0, keepdims=True)[None]
    ssq_ref[...] = jnp.sum(y * y, axis=0, keepdims=True)[None]


def _conv_bn_kernel(p_ref, w_ref, scale_ref, shift_ref, o_ref):
    # Recompute the matmul and apply the folded BatchNorm affine as the
    # epilogue: out = (p @ w) * scale + shift.  Single HBM write of the result.
    y = jnp.dot(p_ref[...], w_ref[...], preferred_element_type=jnp.float32)
    o_ref[...] = (y * scale_ref[...] + shift_ref[...]).astype(o_ref.dtype)


def downsample_forward(x_nchw, conv_w, conv_b, bn_gamma, bn_beta):
    """Conv2d(k=3, s=2, p=1) + BatchNorm2d with batch statistics (train mode).

    x_nchw: (N, Cin, H, W); conv_w: (Cout, Cin, 3, 3) (PyTorch layouts).
    conv_b is accepted for interface parity but mathematically cancelled by
    the train-mode BN mean subtraction, so it is dropped from the compute.
    """
    del conv_b  # cancelled exactly by BN mean-centering (no running stats emitted)
    N, Cin, H, W = x_nchw.shape
    Cout = conv_w.shape[0]
    H_out = (H + 2 - 3) // 2 + 1
    W_out = (W + 2 - 3) // 2 + 1
    M = N * H_out * W_out
    K = 9 * Cin

    # Adaptive channel padding: lane-dense (128-multiple) only when Cout is
    # already >= 128 (real ResNet downsamples, pad is ~free); for tiny Cout
    # accept masked stores at ~Cout to avoid up to 16x output write
    # amplification.
    if Cout >= _LANE:
        C = _round_up(Cout, _LANE)
    else:
        C = _round_up(Cout, _SUBLANE)

    vmem_limit = _vmem_limit_bytes()
    tm = _pick_m_tile(M, K, C, vmem_limit)
    M_pad = _round_up(M, tm)
    nt = M_pad // tm

    # ---- glue: NCHW -> NHWC (bf16), zero-pad, 9 stride-2 taps -> (M_pad, K) --
    # TODO(synk): fuse the im2col into the Pallas passes (implicit GEMM over a
    # padded NHWC slab kept in HBM via memory_space=pl.ANY) to remove the
    # remaining materialized-patch HBM traffic; bf16 taps already halve it.
    # TODO(synk): keep the surrounding model in NHWC to drop both boundary
    # transposes (each is a full HBM pass in XLA).
    x = jnp.transpose(x_nchw, (0, 2, 3, 1)).astype(jnp.bfloat16)
    xp = jnp.pad(x, ((0, 0), (1, 1), (1, 1), (0, 0)))
    taps = [xp[:, kh:kh + 2 * H_out:2, kw:kw + 2 * W_out:2, :]
            for kh in range(3) for kw in range(3)]
    patches = jnp.stack(taps, axis=3).reshape(M, K)
    if M_pad != M:
        patches = jnp.pad(patches, ((0, M_pad - M), (0, 0)))

    # conv weight (Cout, Cin, 3, 3) -> (kh, kw, Cin, Cout) -> (K, Cout),
    # zero-padded to C channels, bf16 for the MXU.
    w_mat = jnp.transpose(conv_w, (2, 3, 1, 0)).reshape(K, Cout)
    w_mat = jnp.pad(w_mat, ((0, 0), (0, C - Cout))).astype(jnp.bfloat16)

    cparams = pltpu.CompilerParams(
        dimension_semantics=("parallel",),      # shards M-tiles across v7x TCs
        vmem_limit_bytes=vmem_limit,
    )

    # ---- pass 1: tiled conv matmul -> per-tile BN partial sums only ----
    psum, pssq = pl.pallas_call(
        _conv_stats_kernel,
        grid=(nt,),
        in_specs=[
            pl.BlockSpec((tm, K), lambda i: (i, 0)),
            pl.BlockSpec((K, C), lambda i: (0, 0)),   # constant index -> fetched once
        ],
        out_specs=[
            pl.BlockSpec((1, 1, C), lambda i: (i, 0, 0)),
            pl.BlockSpec((1, 1, C), lambda i: (i, 0, 0)),
        ],
        out_shape=[
            jax.ShapeDtypeStruct((nt, 1, C), jnp.float32),
            jax.ShapeDtypeStruct((nt, 1, C), jnp.float32),
        ],
        compiler_params=cparams,
    )(patches, w_mat)

    # ---- tiny combine: batch mean/var (f32) -> folded per-channel affine ----
    # Padded rows are all-zero patches (and no conv bias), so they contribute
    # exactly 0 to both partial sums; divide by the true M.
    # NOTE: one-pass E[y^2] - E[y]^2 in f32 is fine for BN-scale activations;
    # switch to shifted/Welford sums if |mean|/std ever gets extreme.
    sum_y = jnp.sum(psum, axis=(0, 1))
    sum_y2 = jnp.sum(pssq, axis=(0, 1))
    mean = sum_y / M
    var = jnp.maximum(sum_y2 / M - mean * mean, 0.0)   # biased var (train-mode BN)
    gamma = jnp.pad(bn_gamma.astype(jnp.float32), (0, C - Cout))
    beta = jnp.pad(bn_beta.astype(jnp.float32), (0, C - Cout))
    inv = gamma * jax.lax.rsqrt(var + BN_EPS)
    scale = inv.reshape(1, C)
    shift = (beta - mean * inv).reshape(1, C)

    # ---- pass 2: recompute matmul + fused BN affine epilogue ----
    # Output kept f32 to match the PyTorch module; emit bf16 here if the
    # downstream consumer accepts it (halves store traffic of this pass).
    out_flat = pl.pallas_call(
        _conv_bn_kernel,
        grid=(nt,),
        in_specs=[
            pl.BlockSpec((tm, K), lambda i: (i, 0)),
            pl.BlockSpec((K, C), lambda i: (0, 0)),
            pl.BlockSpec((1, C), lambda i: (0, 0)),
            pl.BlockSpec((1, C), lambda i: (0, 0)),
        ],
        out_specs=pl.BlockSpec((tm, C), lambda i: (i, 0)),
        out_shape=jax.ShapeDtypeStruct((M_pad, C), jnp.float32),
        compiler_params=cparams,
    )(patches, w_mat, scale, shift)

    # ---- glue: strip padding, flat NHWC -> NCHW (XLA fuses slice+transpose) --
    out = out_flat[:M, :Cout].reshape(N, H_out, W_out, Cout)
    return jnp.transpose(out, (0, 3, 1, 2))


def _reference(x, w, b, gamma, beta):
    y = jax.lax.conv_general_dilated(
        x, w, window_strides=(2, 2), padding=((1, 1), (1, 1)),
        dimension_numbers=("NCHW", "OIHW", "NCHW"))
    y = y + b.reshape(1, -1, 1, 1)
    mean = jnp.mean(y, axis=(0, 2, 3), keepdims=True)
    var = jnp.mean((y - mean) ** 2, axis=(0, 2, 3), keepdims=True)
    return ((y - mean) * jax.lax.rsqrt(var + BN_EPS)
            * gamma.reshape(1, -1, 1, 1) + beta.reshape(1, -1, 1, 1))


if __name__ == "__main__":
    key = jax.random.PRNGKey(0)
    k_x, k_w, k_b, k_g, k_beta = jax.random.split(key, 5)

    N, Cin, H, W = 2, 4, 16, 16
    Cout = 8

    x = jax.random.normal(k_x, (N, Cin, H, W), dtype=jnp.float32)

    # Deterministic parameter init (synthetic, not a checkpoint).
    fan_in = Cin * 3 * 3
    bound = 1.0 / (fan_in ** 0.5)
    conv_w = jax.random.uniform(k_w, (Cout, Cin, 3, 3), minval=-bound, maxval=bound)
    conv_b = jax.random.uniform(k_b, (Cout,), minval=-bound, maxval=bound)
    bn_gamma = jax.random.uniform(k_g, (Cout,), minval=0.5, maxval=1.5)
    bn_beta = jax.random.uniform(k_beta, (Cout,), minval=-0.5, maxval=0.5)

    y = jax.jit(downsample_forward)(x, conv_w, conv_b, bn_gamma, bn_beta)
    jax.block_until_ready(y)
    assert y.shape == (N, Cout, H // 2, W // 2), y.shape

    # Loose-tolerance check vs. a plain-JAX reference (intentional bf16 MXU
    # inputs; BN-normalized activations make 0.1 abs tolerance appropriate).
    y_ref = _reference(x, conv_w, conv_b, bn_gamma, bn_beta)
    err = float(jnp.max(jnp.abs(y - y_ref)))
    assert err < 0.1, f"max abs err {err}"
    print("KERNEL_OK")
</pallas_src>

<mosaic_0001>
module attributes {stable_mosaic.version = 11 : i64} {
  func.func @_conv_stats_kernel(%arg0: i32, %arg1: memref<128x36xbf16, #tpu.memory_space<vmem>>, %arg2: memref<36x8xbf16, #tpu.memory_space<vmem>>, %arg3: memref<1x1x8xf32, #tpu.memory_space<vmem>>, %arg4: memref<1x1x8xf32, #tpu.memory_space<vmem>>) attributes {dimension_semantics = [#tpu.dimension_semantics<parallel>], iteration_bounds = array<i64: 1>, scalar_prefetch = 0 : i64, scratch_operands = 0 : i64, tpu.core_type = #tpu.core_type<tc>, window_params = [{transform_indices = @transform_0, window_bounds = array<i64: 128, 36>}, {pipeline_mode = #tpu.pipeline_mode<synchronous>, transform_indices = @transform_1, window_bounds = array<i64: 36, 8>}, {transform_indices = @transform_2, window_bounds = array<i64: 1, 1, 8>}, {transform_indices = @transform_3, window_bounds = array<i64: 1, 1, 8>}]} {
    %c0 = arith.constant 0 : index
    %c0_0 = arith.constant 0 : index
    %0 = vector.load %arg1[%c0, %c0_0] : memref<128x36xbf16, #tpu.memory_space<vmem>>, vector<128x36xbf16>
    %c0_1 = arith.constant 0 : index
    %c0_2 = arith.constant 0 : index
    %1 = vector.load %arg2[%c0_1, %c0_2] : memref<36x8xbf16, #tpu.memory_space<vmem>>, vector<36x8xbf16>
    %cst = arith.constant dense<0.000000e+00> : vector<128x8xf32>
    %2 = tpu.matmul %0, %1, %cst {dimension_numbers = #tpu.dot_dimension_numbers<[1], [0], [0], [1], [0, 0, 1, 1], [], []>} : vector<128x36xbf16>, vector<36x8xbf16>, vector<128x8xf32> -> vector<128x8xf32>
    %cst_3 = arith.constant dense<0.000000e+00> : vector<8xf32>
    %3 = vector.multi_reduction <add>, %2, %cst_3 [0] : vector<128x8xf32> to vector<8xf32>
    %4 = vector.shape_cast %3 : vector<8xf32> to vector<1x8xf32>
    %5 = vector.shape_cast %4 : vector<1x8xf32> to vector<1x1x8xf32>
    %c0_4 = arith.constant 0 : index
    %c0_5 = arith.constant 0 : index
    %c0_6 = arith.constant 0 : index
    %6 = vector.load %arg3[%c0_4, %c0_5, %c0_6] : memref<1x1x8xf32, #tpu.memory_space<vmem>>, vector<1x1x8xf32>
    tpu.vector_store %arg3[%c0_4, %c0_5, %c0_6], %5 {strides = array<i32>} : memref<1x1x8xf32, #tpu.memory_space<vmem>>, vector<1x1x8xf32>,
    %7 = arith.mulf %2, %2 : vector<128x8xf32>
    %cst_7 = arith.constant dense<0.000000e+00> : vector<8xf32>
    %8 = vector.multi_reduction <add>, %7, %cst_7 [0] : vector<128x8xf32> to vector<8xf32>
    %9 = vector.shape_cast %8 : vector<8xf32> to vector<1x8xf32>
    %10 = vector.shape_cast %9 : vector<1x8xf32> to vector<1x1x8xf32>
    %c0_8 = arith.constant 0 : index
    %c0_9 = arith.constant 0 : index
    %c0_10 = arith.constant 0 : index
    %11 = vector.load %arg4[%c0_8, %c0_9, %c0_10] : memref<1x1x8xf32, #tpu.memory_space<vmem>>, vector<1x1x8xf32>
    tpu.vector_store %arg4[%c0_8, %c0_9, %c0_10], %10 {strides = array<i32>} : memref<1x1x8xf32, #tpu.memory_space<vmem>>, vector<1x1x8xf32>,
    return
  }
  func.func @transform_0(%arg0: i32) -> (i32, i32) {
    %c0_i32 = arith.constant 0 : i32
    %c0_i32_0 = arith.constant 0 : i32
    return %arg0, %c0_i32 : i32, i32
  }
  func.func @transform_1(%arg0: i32) -> (i32, i32) {
    %c0_i32 = arith.constant 0 : i32
    %c0_i32_0 = arith.constant 0 : i32
    %c0_i32_1 = arith.constant 0 : i32
    return %c0_i32, %c0_i32_0 : i32, i32
  }
  func.func @transform_2(%arg0: i32) -> (i32, i32, i32) {
    %c0_i32 = arith.constant 0 : i32
    %c0_i32_0 = arith.constant 0 : i32
    %c0_i32_1 = arith.constant 0 : i32
    return %arg0, %c0_i32, %c0_i32_0 : i32, i32, i32
  }
  func.func @transform_3(%arg0: i32) -> (i32, i32, i32) {
    %c0_i32 = arith.constant 0 : i32
    %c0_i32_0 = arith.constant 0 : i32
    %c0_i32_1 = arith.constant 0 : i32
    return %arg0, %c0_i32, %c0_i32_0 : i32, i32, i32
  }
}

module attributes {stable_mosaic.version = 11 : i64} {
  func.func @_conv_bn_kernel(%arg0: i32, %arg1: memref<128x36xbf16, #tpu.memory_space<vmem>>, %arg2: memref<36x8xbf16, #tpu.memory_space<vmem>>, %arg3: memref<1x8xf32, #tpu.memory_space<vmem>>, %arg4: memref<1x8xf32, #tpu.memory_space<vmem>>, %arg5: memref<128x8xf32, #tpu.memory_space<vmem>>) attributes {dimension_semantics = [#tpu.dimension_semantics<parallel>], iteration_bounds = array<i64: 1>, scalar_prefetch = 0 : i64, scratch_operands = 0 : i64, tpu.core_type = #tpu.core_type<tc>, window_params = [{transform_indices = @transform_0, window_bounds = array<i64: 128, 36>}, {pipeline_mode = #tpu.pipeline_mode<synchronous>, transform_indices = @transform_1, window_bounds = array<i64: 36, 8>}, {pipeline_mode = #tpu.pipeline_mode<synchronous>, transform_indices = @transform_2, window_bounds = array<i64: 1, 8>}, {pipeline_mode = #tpu.pipeline_mode<synchronous>, transform_indices = @transform_3, window_bounds = array<i64: 1, 8>}, {transform_indices = @transform_4, window_bounds = array<i64: 128, 8>}]} {
    %c0 = arith.constant 0 : index
    %c0_0 = arith.constant 0 : index
    %0 = vector.load %arg1[%c0, %c0_0] : memref<128x36xbf16, #tpu.memory_space<vmem>>, vector<128x36xbf16>
    %c0_1 = arith.constant 0 : index
    %c0_2 = arith.constant 0 : index
    %1 = vector.load %arg2[%c0_1, %c0_2] : memref<36x8xbf16, #tpu.memory_space<vmem>>, vector<36x8xbf16>
    %cst = arith.constant dense<0.000000e+00> : vector<128x8xf32>
    %2 = tpu.matmul %0, %1, %cst {dimension_numbers = #tpu.dot_dimension_numbers<[1], [0], [0], [1], [0, 0, 1, 1], [], []>} : vector<128x36xbf16>, vector<36x8xbf16>, vector<128x8xf32> -> vector<128x8xf32>
    %c0_3 = arith.constant 0 : index
    %c0_4 = arith.constant 0 : index
    %3 = vector.load %arg3[%c0_3, %c0_4] : memref<1x8xf32, #tpu.memory_space<vmem>>, vector<1x8xf32>
    %4 = vector.broadcast %3 : vector<1x8xf32> to vector<128x8xf32>
    %5 = arith.mulf %2, %4 : vector<128x8xf32>
    %c0_5 = arith.constant 0 : index
    %c0_6 = arith.constant 0 : index
    %6 = vector.load %arg4[%c0_5, %c0_6] : memref<1x8xf32, #tpu.memory_space<vmem>>, vector<1x8xf32>
    %7 = vector.broadcast %6 : vector<1x8xf32> to vector<128x8xf32>
    %8 = arith.addf %5, %7 : vector<128x8xf32>
    %c0_7 = arith.constant 0 : index
    %c0_8 = arith.constant 0 : index
    %9 = vector.load %arg5[%c0_7, %c0_8] : memref<128x8xf32, #tpu.memory_space<vmem>>, vector<128x8xf32>
    tpu.vector_store %arg5[%c0_7, %c0_8], %8 {strides = array<i32>} : memref<128x8xf32, #tpu.memory_space<vmem>>, vector<128x8xf32>,
    return
  }
  func.func @transform_0(%arg0: i32) -> (i32, i32) {
    %c0_i32 = arith.constant 0 : i32
    %c0_i32_0 = arith.constant 0 : i32
    return %arg0, %c0_i32 : i32, i32
  }
  func.func @transform_1(%arg0: i32) -> (i32, i32) {
    %c0_i32 = arith.constant 0 : i32
    %c0_i32_0 = arith.constant 0 : i32
    %c0_i32_1 = arith.constant 0 : i32
    return %c0_i32, %c0_i32_0 : i32, i32
  }
  func.func @transform_2(%arg0: i32) -> (i32, i32) {
    %c0_i32 = arith.constant 0 : i32
    %c0_i32_0 = arith.constant 0 : i32
    %c0_i32_1 = arith.constant 0 : i32
    return %c0_i32, %c0_i32_0 : i32, i32
  }
  func.func @transform_3(%arg0: i32) -> (i32, i32) {
    %c0_i32 = arith.constant 0 : i32
    %c0_i32_0 = arith.constant 0 : i32
    %c0_i32_1 = arith.constant 0 : i32
    return %c0_i32, %c0_i32_0 : i32, i32
  }
  func.func @transform_4(%arg0: i32) -> (i32, i32) {
    %c0_i32 = arith.constant 0 : i32
    %c0_i32_0 = arith.constant 0 : i32
    return %arg0, %c0_i32 : i32, i32
  }
}

</mosaic_0001>

<llo_original>
// kernel: downsample_forward.2
$region0: #{downsample_forward.2}
  #allocation0 [shape = 'u32[]', space=smem, size = 0x4, offset = 0x4, fixed_abs, tag = 'smem constant byte address 0x4 - core index']
  #allocation1 [shape = 'u32[144,128]{1,0:T(1,128)}', space=vmem, size = 0x12000, scoped, tag = 'internal scratch']
  %s0 = inlined_call_operand.vmem [shape: bf16[128,36], index: 0, kind: input, shape index: {}]
  %s1 = inlined_call_operand.vmem [shape: bf16[36,8], index: 1, kind: input, shape index: {}]
  %s2 = inlined_call_operand.vmem [shape: f32[1,1,8], index: 2, kind: output, shape index: {0}]
  %s3 = inlined_call_operand.vmem [shape: f32[1,1,8], index: 3, kind: output, shape index: {1}]
  %4 = xla_tuple %s2, %s3
  %s5 = sld [smem:[#allocation0]]
  $region26: #{downsample_forward.2} parent=0
    _
  %s7 = ssub.s32 1, %s5
  %s8 = scalar_select 0, %s7, %s5
  // Predicated region
  $region2: #{downsample_forward.2} parent=0 // pred_check
    _
  $region3: #{downsample_forward.2} parent=0 // pred_check_branch
    %10 = sbr.rel (0) target = $region5
  $region4: #{downsample_forward.2} parent=0 // pred_region
    _
  $region5: #{downsample_forward.2} parent=0 // pred_fallthru
    _
  // Predicated region
  $region6: #{downsample_forward.2} parent=0 // pred_check
    _
  $region7: #{downsample_forward.2} parent=0 // pred_check_branch
    %12 = sbr.rel (0) target = $region9
  $region8: #{downsample_forward.2} parent=0 // pred_region
    _
  $region9: #{downsample_forward.2} parent=0 // pred_fallthru
    _
  %v14 = vld [vmem:[%s0] sm:$0xf]
  %v15 = vld [vmem:[%s0 + $0x4] sm:$0xf]
  %v16 = vld [vmem:[%s0 + $0x8] sm:$0xf]
  %v17 = vld [vmem:[%s0 + $0xc] sm:$0xf]
  %v18 = vld [vmem:[%s0 + $0x10] sm:$0xf]
  %v19 = vld [vmem:[%s0 + $0x14] sm:$0xf]
  %v20 = vld [vmem:[%s0 + $0x18] sm:$0xf]
  %v21 = vld [vmem:[%s0 + $0x1c] sm:$0xf]
  %v22 = vld [vmem:[%s0 + $0x20] sm:$0xf]
  %v23 = vld [vmem:[%s0 + $0x24] sm:$0xf]
  %v24 = vld [vmem:[%s0 + $0x28] sm:$0xf]
  %v25 = vld [vmem:[%s0 + $0x2c] sm:$0xf]
  %v26 = vld [vmem:[%s0 + $0x30] sm:$0xf]
  %v27 = vld [vmem:[%s0 + $0x34] sm:$0xf]
  %v28 = vld [vmem:[%s0 + $0x38] sm:$0xf]
  %v29 = vld [vmem:[%s0 + $0x3c] sm:$0xf]
  %v30 = vld [vmem:[%s1] sm:$0xf]
  %v31 = vld [vmem:[%s1 + $0x4] sm:$0xf]
  %v32 = vld [vmem:[%s1 + $0x8] sm:$0xf]
  %v33 = vld [vmem:[%s1 + $0xc] sm:$0xf]
  %v34 = vld [vmem:[%s1 + $0x10] sm:$0x3]
  %v51 = vunpack.c.l.b16 %v14
  %v52 = vunpack.c.l.b16 %v15
  %v53 = vunpack.c.l.b16 %v16
  %v54 = vunpack.c.l.b16 %v17
  %v55 = vunpack.c.l.b16 %v18
  %v56 = vunpack.c.l.b16 %v19
  %v57 = vunpack.c.l.b16 %v20
  %v58 = vunpack.c.l.b16 %v21
  %v59 = vunpack.c.l.b16 %v22
  %v60 = vunpack.c.l.b16 %v23
  %v61 = vunpack.c.l.b16 %v24
  %v62 = vunpack.c.l.b16 %v25
  %v63 = vunpack.c.l.b16 %v26
  %v64 = vunpack.c.l.b16 %v27
  %v65 = vunpack.c.l.b16 %v28
  %v66 = vunpack.c.l.b16 %v29
  %v67 = vpack.c.b16 %v52, %v51
  %v68 = vpack.c.b16 %v54, %v53
  %v69 = vpack.c.b16 %v56, %v55
  %v70 = vpack.c.b16 %v58, %v57
  %v71 = vpack.c.b16 %v60, %v59
  %v72 = vpack.c.b16 %v62, %v61
  %v73 = vpack.c.b16 %v64, %v63
  %v74 = vpack.c.b16 %v66, %v65
  %v80 = vunpack.c.l.b16 %v30
  %v81 = vunpack.c.l.b16 %v31
  %v82 = vunpack.c.l.b16 %v32
  %v83 = vunpack.c.l.b16 %v33
  %v84 = vunpack.c.l.b16 %v34
  %v85 = vpack.c.b16 %v81, %v80
  %v86 = vpack.c.b16 %v83, %v82
  %v87 = vpack.c.b16 %v84, %v84
  %vm90 = vcmask 293888
  %v92 = vsel %vm90, %v67, 0
  %v95 = vsel %vm90, %v68, 0
  %v98 = vsel %vm90, %v69, 0
  %v101 = vsel %vm90, %v70, 0
  %v104 = vsel %vm90, %v71, 0
  %v107 = vsel %vm90, %v72, 0
  %v110 = vsel %vm90, %v73, 0
  %v113 = vsel %vm90, %v74, 0
  %vm115 = vcmask 1041408
  %v117 = vsel %vm115, %v87, 0
  %119 = vmatprep.subr.bf16.mxu0 0
  %120 = vmatpush1.bf16.msra.mxu0 %v85
  %121 = vmatprep.subr.bf16.mxu0 0
  %122 = vmatpush1.bf16.msra.mxu0 %v86
  %123 = vmatprep.subr.bf16.mxu0 0
  %124 = vmatpush1.bf16.msra.mxu0 %v117
  %125 = vmatprep.subr.bf16.mxu0 0
  %126 = vmatpush1.bf16.msra.mxu0 0
  %127 = vmatprep.subr.bf16.mxu0 0
  %128 = vmatpush1.bf16.msra.mxu0 0
  %129 = vmatprep.subr.bf16.mxu0 0
  %130 = vmatpush1.bf16.msra.mxu0 0
  %131 = vmatprep.subr.bf16.mxu0 0
  %132 = vmatpush1.bf16.msra.mxu0 0
  %133 = vmatprep.subr.bf16.mxu0 0
  %134 = vmatpush1.bf16.msra.mxu0 0
  %135 = vmatprep.subr.bf16.mxu0 0
  %136 = vmatpush1.bf16.msra.mxu0 0
  %137 = vmatprep.subr.bf16.mxu0 0
  %138 = vmatpush1.bf16.msra.mxu0 0
  %139 = vmatprep.subr.bf16.mxu0 0
  %140 = vmatpush1.bf16.msra.mxu0 0
  %141 = vmatprep.subr.bf16.mxu0 0
  %142 = vmatpush1.bf16.msra.mxu0 0
  %143 = vmatprep.subr.bf16.mxu0 0
  %144 = vmatpush1.bf16.msra.mxu0 0
  %145 = vmatprep.subr.bf16.mxu0 0
  %146 = vmatpush1.bf16.msra.mxu0 0
  %147 = vmatprep.subr.bf16.mxu0 0
  %148 = vmatpush1.bf16.msra.mxu0 0
  %149 = vmatprep.subr.bf16.mxu0 0
  %150 = vmatpush1.bf16.msra.mxu0 0
  %151 = vmatprep.mubr.bf16.mxu0 0
  %152 = vmatmul.mubr.bf16.gmra.mrb[0].mxu0 %v92
  %v153 = vpop.f32.mrb[0].mxu0
  %v154 = vadd.f32 0.0, %v153
  %v155 = vpop.f32.mrb[0].mxu0
  %v156 = vpop.f32.mrb[0].mxu0
  %v157 = vadd.f32 0.0, %v156
  %v158 = vpop.f32.mrb[0].mxu0
  %159 = vmatprep.mubr.bf16.mxu0 0
  %160 = vmatmul.mubr.bf16.gmra.mrb[0].mxu0 %v95
  %v161 = vpop.f32.mrb[0].mxu0
  %v162 = vadd.f32 0.0, %v161
  %v163 = vpop.f32.mrb[0].mxu0
  %v164 = vpop.f32.mrb[0].mxu0
  %v165 = vadd.f32 0.0, %v164
  %v166 = vpop.f32.mrb[0].mxu0
  %167 = vmatprep.mubr.bf16.mxu0 0
  %168 = vmatmul.mubr.bf16.gmra.mrb[0].mxu0 %v98
  %v169 = vpop.f32.mrb[0].mxu0
  %v170 = vadd.f32 0.0, %v169
  %v171 = vpop.f32.mrb[0].mxu0
  %v172 = vpop.f32.mrb[0].mxu0
  %v173 = vadd.f32 0.0, %v172
  %v174 = vpop.f32.mrb[0].mxu0
  %175 = vmatprep.mubr.bf16.mxu0 0
  %176 = vmatmul.mubr.bf16.gmra.mrb[0].mxu0 %v101
  %v177 = vpop.f32.mrb[0].mxu0
  %v178 = vadd.f32 0.0, %v177
  %v179 = vpop.f32.mrb[0].mxu0
  %v180 = vpop.f32.mrb[0].mxu0
  %v181 = vadd.f32 0.0, %v180
  %v182 = vpop.f32.mrb[0].mxu0
  %183 = vmatprep.mubr.bf16.mxu0 0
  %184 = vmatmul.mubr.bf16.gmra.mrb[0].mxu0 %v104
  %v185 = vpop.f32.mrb[0].mxu0
  %v186 = vadd.f32 0.0, %v185
  %v187 = vpop.f32.mrb[0].mxu0
  %v188 = vpop.f32.mrb[0].mxu0
  %v189 = vadd.f32 0.0, %v188
  %v190 = vpop.f32.mrb[0].mxu0
  %191 = vmatprep.mubr.bf16.mxu0 0
  %192 = vmatmul.mubr.bf16.gmra.mrb[0].mxu0 %v107
  %v193 = vpop.f32.mrb[0].mxu0
  %v194 = vadd.f32 0.0, %v193
  %v195 = vpop.f32.mrb[0].mxu0
  %v196 = vpop.f32.mrb[0].mxu0
  %v197 = vadd.f32 0.0, %v196
  %v198 = vpop.f32.mrb[0].mxu0
  %199 = vmatprep.mubr.bf16.mxu0 0
  %200 = vmatmul.mubr.bf16.gmra.mrb[0].mxu0 %v110
  %v201 = vpop.f32.mrb[0].mxu0
  %v202 = vadd.f32 0.0, %v201
  %v203 = vpop.f32.mrb[0].mxu0
  %v204 = vpop.f32.mrb[0].mxu0
  %v205 = vadd.f32 0.0, %v204
  %v206 = vpop.f32.mrb[0].mxu0
  %207 = vmatprep.mubr.bf16.mxu0 0
  %208 = vmatmul.mubr.bf16.gmra.mrb[0].mxu0 %v113
  %v209 = vpop.f32.mrb[0].mxu0
  %v210 = vadd.f32 0.0, %v209
  %v211 = vpop.f32.mrb[0].mxu0
  %v212 = vpop.f32.mrb[0].mxu0
  %v213 = vadd.f32 0.0, %v212
  %v214 = vpop.f32.mrb[0].mxu0
  %215 = vdwg.mxu0
  %vm216 = vcmask 64512
  %v217 = vsel %vm216, %v154, 0.0
  %v218 = vsel %vm216, %v157, 0.0
  %v219 = vadd.f32 %v217, %v218
  %v220 = vsel %vm216, %v162, 0.0
  %v221 = vadd.f32 %v219, %v220
  %v222 = vsel %vm216, %v165, 0.0
  %v223 = vadd.f32 %v221, %v222
  %v224 = vsel %vm216, %v170, 0.0
  %v225 = vadd.f32 %v223, %v224
  %v226 = vsel %vm216, %v173, 0.0
  %v227 = vadd.f32 %v225, %v226
  %v228 = vsel %vm216, %v178, 0.0
  %v229 = vadd.f32 %v227, %v228
  %v230 = vsel %vm216, %v181, 0.0
  %v231 = vadd.f32 %v229, %v230
  %v232 = vsel %vm216, %v186, 0.0
  %v233 = vadd.f32 %v231, %v232
  %v234 = vsel %vm216, %v189, 0.0
  %v235 = vadd.f32 %v233, %v234
  %v236 = vsel %vm216, %v194, 0.0
  %v237 = vadd.f32 %v235, %v236
  %v238 = vsel %vm216, %v197, 0.0
  %v239 = vadd.f32 %v237, %v238
  %v240 = vsel %vm216, %v202, 0.0
  %v241 = vadd.f32 %v239, %v240
  %v242 = vsel %vm216, %v205, 0.0
  %v243 = vadd.f32 %v241, %v242
  %v244 = vsel %vm216, %v210, 0.0
  %v245 = vadd.f32 %v243, %v244
  %v246 = vsel %vm216, %v213, 0.0
  %v247 = vadd.f32 %v245, %v246
  %v248 = vrot.slane %v247, 4
  %v249 = vadd.f32 %v247, %v248
  %v250 = vrot.slane %v249, 2
  %v251 = vadd.f32 %v249, %v250
  %v252 = vrot.slane %v251, 1
  %v253 = vadd.f32 %v251, %v252
  %vm254 = vcmask 57344
  %255 = vst.msk [vmem:[%s2] sm:$0x1] %vm254, %v253
  %v256 = vmul.f32 %v154, %v154
  %v257 = vmul.f32 %v157, %v157
  %v258 = vmul.f32 %v162, %v162
  %v259 = vmul.f32 %v165, %v165
  %v260 = vmul.f32 %v170, %v170
  %v261 = vmul.f32 %v173, %v173
  %v262 = vmul.f32 %v178, %v178
  %v263 = vmul.f32 %v181, %v181
  %v264 = vmul.f32 %v186, %v186
  %v265 = vmul.f32 %v189, %v189
  %v266 = vmul.f32 %v194, %v194
  %v267 = vmul.f32 %v197, %v197
  %v268 = vmul.f32 %v202, %v202
  %v269 = vmul.f32 %v205, %v205
  %v270 = vmul.f32 %v210, %v210
  %v271 = vmul.f32 %v213, %v213
  %v272 = vsel %vm216, %v256, 0.0
  %v273 = vsel %vm216, %v257, 0.0
  %v274 = vadd.f32 %v272, %v273
  %v275 = vsel %vm216, %v258, 0.0
  %v276 = vadd.f32 %v274, %v275
  %v277 = vsel %vm216, %v259, 0.0
  %v278 = vadd.f32 %v276, %v277
  %v279 = vsel %vm216, %v260, 0.0
  %v280 = vadd.f32 %v278, %v279
  %v281 = vsel %vm216, %v261, 0.0
  %v282 = vadd.f32 %v280, %v281
  %v283 = vsel %vm216, %v262, 0.0
  %v284 = vadd.f32 %v282, %v283
  %v285 = vsel %vm216, %v263, 0.0
  %v286 = vadd.f32 %v284, %v285
  %v287 = vsel %vm216, %v264, 0.0
  %v288 = vadd.f32 %v286, %v287
  %v289 = vsel %vm216, %v265, 0.0
  %v290 = vadd.f32 %v288, %v289
  %v291 = vsel %vm216, %v266, 0.0
  %v292 = vadd.f32 %v290, %v291
  %v293 = vsel %vm216, %v267, 0.0
  %v294 = vadd.f32 %v292, %v293
  %v295 = vsel %vm216, %v268, 0.0
  %v296 = vadd.f32 %v294, %v295
  %v297 = vsel %vm216, %v269, 0.0
  %v298 = vadd.f32 %v296, %v297
  %v299 = vsel %vm216, %v270, 0.0
  %v300 = vadd.f32 %v298, %v299
  %v301 = vsel %vm216, %v271, 0.0
  %v302 = vadd.f32 %v300, %v301
  %v303 = vrot.slane %v302, 4
  %v304 = vadd.f32 %v302, %v303
  %v305 = vrot.slane %v304, 2
  %v306 = vadd.f32 %v304, %v305
  %v307 = vrot.slane %v306, 1
  %v308 = vadd.f32 %v306, %v307
  %309 = vst.msk [vmem:[%s3] sm:$0x1] %vm254, %v308
  // Predicated region
  $region10: #{downsample_forward.2} parent=0 // pred_check
    _
  $region11: #{downsample_forward.2} parent=0 // pred_check_branch
    %311 = sbr.rel (0) target = $region13
  $region12: #{downsample_forward.2} parent=0 // pred_region
    _
  $region13: #{downsample_forward.2} parent=0 // pred_fallthru
    _
  // Predicated region
  $region14: #{downsample_forward.2} parent=0 // pred_check
    _
  $region15: #{downsample_forward.2} parent=0 // pred_check_branch
    %313 = sbr.rel (0) target = $region17
  $region16: #{downsample_forward.2} parent=0 // pred_region
    _
  $region17: #{downsample_forward.2} parent=0 // pred_fallthru
    _
  // Predicated region
  $region18: #{downsample_forward.2} parent=0 // pred_check
    _
  $region19: #{downsample_forward.2} parent=0 // pred_check_branch
    %315 = sbr.rel (0) target = $region21
  $region20: #{downsample_forward.2} parent=0 // pred_region
    _
  $region21: #{downsample_forward.2} parent=0 // pred_fallthru
    _
  // Predicated region
  $region22: #{downsample_forward.2} parent=0 // pred_check
    _
  $region23: #{downsample_forward.2} parent=0 // pred_check_branch
    %317 = sbr.rel (0) target = $region25
  $region24: #{downsample_forward.2} parent=0 // pred_region
    _
  $region25: #{downsample_forward.2} parent=0 // pred_fallthru
    _

// kernel: downsample_forward.3
$region0: #{downsample_forward.3}
  #allocation0 [shape = 'u32[]', space=smem, size = 0x4, offset = 0x4, fixed_abs, tag = 'smem constant byte address 0x4 - core index']
  #allocation1 [shape = 'u32[144,128]{1,0:T(1,128)}', space=vmem, size = 0x12000, scoped, tag = 'internal scratch']
  %s0 = inlined_call_operand.vmem [shape: bf16[128,36], index: 0, kind: input, shape index: {}]
  %s1 = inlined_call_operand.vmem [shape: bf16[36,8], index: 1, kind: input, shape index: {}]
  %s2 = inlined_call_operand.vmem [shape: f32[1,8], index: 2, kind: input, shape index: {}]
  %s3 = inlined_call_operand.vmem [shape: f32[1,8], index: 3, kind: input, shape index: {}]
  %s4 = inlined_call_operand.vmem [shape: f32[128,8], index: 4, kind: output, shape index: {}]
  %s5 = sld [smem:[#allocation0]]
  $region26: #{downsample_forward.3} parent=0
    _
  %s7 = ssub.s32 1, %s5
  %s8 = scalar_select 0, %s7, %s5
  // Predicated region
  $region2: #{downsample_forward.3} parent=0 // pred_check
    _
  $region3: #{downsample_forward.3} parent=0 // pred_check_branch
    %10 = sbr.rel (0) target = $region5
  $region4: #{downsample_forward.3} parent=0 // pred_region
    _
  $region5: #{downsample_forward.3} parent=0 // pred_fallthru
    _
  // Predicated region
  $region6: #{downsample_forward.3} parent=0 // pred_check
    _
  $region7: #{downsample_forward.3} parent=0 // pred_check_branch
    %12 = sbr.rel (0) target = $region9
  $region8: #{downsample_forward.3} parent=0 // pred_region
    _
  $region9: #{downsample_forward.3} parent=0 // pred_fallthru
    _
  // Predicated region
  $region10: #{downsample_forward.3} parent=0 // pred_check
    _
  $region11: #{downsample_forward.3} parent=0 // pred_check_branch
    %14 = sbr.rel (0) target = $region13
  $region12: #{downsample_forward.3} parent=0 // pred_region
    _
  $region13: #{downsample_forward.3} parent=0 // pred_fallthru
    _
  // Predicated region
  $region14: #{downsample_forward.3} parent=0 // pred_check
    _
  $region15: #{downsample_forward.3} parent=0 // pred_check_branch
    %16 = sbr.rel (0) target = $region17
  $region16: #{downsample_forward.3} parent=0 // pred_region
    _
  $region17: #{downsample_forward.3} parent=0 // pred_fallthru
    _
  %v18 = vld [vmem:[%s0] sm:$0xf]
  %v19 = vld [vmem:[%s0 + $0x4] sm:$0xf]
  %v20 = vld [vmem:[%s0 + $0x8] sm:$0xf]
  %v21 = vld [vmem:[%s0 + $0xc] sm:$0xf]
  %v22 = vld [vmem:[%s0 + $0x10] sm:$0xf]
  %v23 = vld [vmem:[%s0 + $0x14] sm:$0xf]
  %v24 = vld [vmem:[%s0 + $0x18] sm:$0xf]
  %v25 = vld [vmem:[%s0 + $0x1c] sm:$0xf]
  %v26 = vld [vmem:[%s0 + $0x20] sm:$0xf]
  %v27 = vld [vmem:[%s0 + $0x24] sm:$0xf]
  %v28 = vld [vmem:[%s0 + $0x28] sm:$0xf]
  %v29 = vld [vmem:[%s0 + $0x2c] sm:$0xf]
  %v30 = vld [vmem:[%s0 + $0x30] sm:$0xf]
  %v31 = vld [vmem:[%s0 + $0x34] sm:$0xf]
  %v32 = vld [vmem:[%s0 + $0x38] sm:$0xf]
  %v33 = vld [vmem:[%s0 + $0x3c] sm:$0xf]
  %v34 = vld [vmem:[%s1] sm:$0xf]
  %v35 = vld [vmem:[%s1 + $0x4] sm:$0xf]
  %v36 = vld [vmem:[%s1 + $0x8] sm:$0xf]
  %v37 = vld [vmem:[%s1 + $0xc] sm:$0xf]
  %v38 = vld [vmem:[%s1 + $0x10] sm:$0x3]
  %v55 = vunpack.c.l.b16 %v18
  %v56 = vunpack.c.l.b16 %v19
  %v57 = vunpack.c.l.b16 %v20
  %v58 = vunpack.c.l.b16 %v21
  %v59 = vunpack.c.l.b16 %v22
  %v60 = vunpack.c.l.b16 %v23
  %v61 = vunpack.c.l.b16 %v24
  %v62 = vunpack.c.l.b16 %v25
  %v63 = vunpack.c.l.b16 %v26
  %v64 = vunpack.c.l.b16 %v27
  %v65 = vunpack.c.l.b16 %v28
  %v66 = vunpack.c.l.b16 %v29
  %v67 = vunpack.c.l.b16 %v30
  %v68 = vunpack.c.l.b16 %v31
  %v69 = vunpack.c.l.b16 %v32
  %v70 = vunpack.c.l.b16 %v33
  %v71 = vpack.c.b16 %v56, %v55
  %v72 = vpack.c.b16 %v58, %v57
  %v73 = vpack.c.b16 %v60, %v59
  %v74 = vpack.c.b16 %v62, %v61
  %v75 = vpack.c.b16 %v64, %v63
  %v76 = vpack.c.b16 %v66, %v65
  %v77 = vpack.c.b16 %v68, %v67
  %v78 = vpack.c.b16 %v70, %v69
  %v84 = vunpack.c.l.b16 %v34
  %v85 = vunpack.c.l.b16 %v35
  %v86 = vunpack.c.l.b16 %v36
  %v87 = vunpack.c.l.b16 %v37
  %v88 = vunpack.c.l.b16 %v38
  %v89 = vpack.c.b16 %v85, %v84
  %v90 = vpack.c.b16 %v87, %v86
  %v91 = vpack.c.b16 %v88, %v88
  %vm94 = vcmask 293888
  %v96 = vsel %vm94, %v71, 0
  %v99 = vsel %vm94, %v72, 0
  %v102 = vsel %vm94, %v73, 0
  %v105 = vsel %vm94, %v74, 0
  %v108 = vsel %vm94, %v75, 0
  %v111 = vsel %vm94, %v76, 0
  %v114 = vsel %vm94, %v77, 0
  %v117 = vsel %vm94, %v78, 0
  %vm119 = vcmask 1041408
  %v121 = vsel %vm119, %v91, 0
  %123 = vmatprep.subr.bf16.mxu0 0
  %124 = vmatpush1.bf16.msra.mxu0 %v89
  %125 = vmatprep.subr.bf16.mxu0 0
  %126 = vmatpush1.bf16.msra.mxu0 %v90
  %127 = vmatprep.subr.bf16.mxu0 0
  %128 = vmatpush1.bf16.msra.mxu0 %v121
  %129 = vmatprep.subr.bf16.mxu0 0
  %130 = vmatpush1.bf16.msra.mxu0 0
  %131 = vmatprep.subr.bf16.mxu0 0
  %132 = vmatpush1.bf16.msra.mxu0 0
  %133 = vmatprep.subr.bf16.mxu0 0
  %134 = vmatpush1.bf16.msra.mxu0 0
  %135 = vmatprep.subr.bf16.mxu0 0
  %136 = vmatpush1.bf16.msra.mxu0 0
  %137 = vmatprep.subr.bf16.mxu0 0
  %138 = vmatpush1.bf16.msra.mxu0 0
  %139 = vmatprep.subr.bf16.mxu0 0
  %140 = vmatpush1.bf16.msra.mxu0 0
  %141 = vmatprep.subr.bf16.mxu0 0
  %142 = vmatpush1.bf16.msra.mxu0 0
  %143 = vmatprep.subr.bf16.mxu0 0
  %144 = vmatpush1.bf16.msra.mxu0 0
  %145 = vmatprep.subr.bf16.mxu0 0
  %146 = vmatpush1.bf16.msra.mxu0 0
  %147 = vmatprep.subr.bf16.mxu0 0
  %148 = vmatpush1.bf16.msra.mxu0 0
  %149 = vmatprep.subr.bf16.mxu0 0
  %150 = vmatpush1.bf16.msra.mxu0 0
  %151 = vmatprep.subr.bf16.mxu0 0
  %152 = vmatpush1.bf16.msra.mxu0 0
  %153 = vmatprep.subr.bf16.mxu0 0
  %154 = vmatpush1.bf16.msra.mxu0 0
  %155 = vmatprep.mubr.bf16.mxu0 0
  %156 = vmatmul.mubr.bf16.gmra.mrb[0].mxu0 %v96
  %v157 = vpop.f32.mrb[0].mxu0
  %v158 = vadd.f32 0.0, %v157
  %v159 = vpop.f32.mrb[0].mxu0
  %v160 = vpop.f32.mrb[0].mxu0
  %v161 = vadd.f32 0.0, %v160
  %v162 = vpop.f32.mrb[0].mxu0
  %163 = vmatprep.mubr.bf16.mxu0 0
  %164 = vmatmul.mubr.bf16.gmra.mrb[0].mxu0 %v99
  %v165 = vpop.f32.mrb[0].mxu0
  %v166 = vadd.f32 0.0, %v165
  %v167 = vpop.f32.mrb[0].mxu0
  %v168 = vpop.f32.mrb[0].mxu0
  %v169 = vadd.f32 0.0, %v168
  %v170 = vpop.f32.mrb[0].mxu0
  %171 = vmatprep.mubr.bf16.mxu0 0
  %172 = vmatmul.mubr.bf16.gmra.mrb[0].mxu0 %v102
  %v173 = vpop.f32.mrb[0].mxu0
  %v174 = vadd.f32 0.0, %v173
  %v175 = vpop.f32.mrb[0].mxu0
  %v176 = vpop.f32.mrb[0].mxu0
  %v177 = vadd.f32 0.0, %v176
  %v178 = vpop.f32.mrb[0].mxu0
  %179 = vmatprep.mubr.bf16.mxu0 0
  %180 = vmatmul.mubr.bf16.gmra.mrb[0].mxu0 %v105
  %v181 = vpop.f32.mrb[0].mxu0
  %v182 = vadd.f32 0.0, %v181
  %v183 = vpop.f32.mrb[0].mxu0
  %v184 = vpop.f32.mrb[0].mxu0
  %v185 = vadd.f32 0.0, %v184
  %v186 = vpop.f32.mrb[0].mxu0
  %187 = vmatprep.mubr.bf16.mxu0 0
  %188 = vmatmul.mubr.bf16.gmra.mrb[0].mxu0 %v108
  %v189 = vpop.f32.mrb[0].mxu0
  %v190 = vadd.f32 0.0, %v189
  %v191 = vpop.f32.mrb[0].mxu0
  %v192 = vpop.f32.mrb[0].mxu0
  %v193 = vadd.f32 0.0, %v192
  %v194 = vpop.f32.mrb[0].mxu0
  %195 = vmatprep.mubr.bf16.mxu0 0
  %196 = vmatmul.mubr.bf16.gmra.mrb[0].mxu0 %v111
  %v197 = vpop.f32.mrb[0].mxu0
  %v198 = vadd.f32 0.0, %v197
  %v199 = vpop.f32.mrb[0].mxu0
  %v200 = vpop.f32.mrb[0].mxu0
  %v201 = vadd.f32 0.0, %v200
  %v202 = vpop.f32.mrb[0].mxu0
  %203 = vmatprep.mubr.bf16.mxu0 0
  %204 = vmatmul.mubr.bf16.gmra.mrb[0].mxu0 %v114
  %v205 = vpop.f32.mrb[0].mxu0
  %v206 = vadd.f32 0.0, %v205
  %v207 = vpop.f32.mrb[0].mxu0
  %v208 = vpop.f32.mrb[0].mxu0
  %v209 = vadd.f32 0.0, %v208
  %v210 = vpop.f32.mrb[0].mxu0
  %211 = vmatprep.mubr.bf16.mxu0 0
  %212 = vmatmul.mubr.bf16.gmra.mrb[0].mxu0 %v117
  %v213 = vpop.f32.mrb[0].mxu0
  %v214 = vadd.f32 0.0, %v213
  %v215 = vpop.f32.mrb[0].mxu0
  %v216 = vpop.f32.mrb[0].mxu0
  %v217 = vadd.f32 0.0, %v216
  %v218 = vpop.f32.mrb[0].mxu0
  %219 = vdwg.mxu0
  %v220 = vld [vmem:[%s2] sm:$0x1]
  %v222 = vlaneseq
  %v223 = vshrl.u32 %v222, 7
  %v224 = vsub.s32 0, %v223
  %v225 = vrot.slane %v220, %v224
  %v227 = vmul.f32 %v158, %v225
  %v228 = vmul.f32 %v161, %v225
  %v229 = vmul.f32 %v166, %v225
  %v230 = vmul.f32 %v169, %v225
  %v231 = vmul.f32 %v174, %v225
  %v232 = vmul.f32 %v177, %v225
  %v233 = vmul.f32 %v182, %v225
  %v234 = vmul.f32 %v185, %v225
  %v235 = vmul.f32 %v190, %v225
  %v236 = vmul.f32 %v193, %v225
  %v237 = vmul.f32 %v198, %v225
  %v238 = vmul.f32 %v201, %v225
  %v239 = vmul.f32 %v206, %v225
  %v240 = vmul.f32 %v209, %v225
  %v241 = vmul.f32 %v214, %v225
  %v242 = vmul.f32 %v217, %v225
  %v243 = vld [vmem:[%s3] sm:$0x1]
  %v245 = vlaneseq
  %v246 = vshrl.u32 %v245, 7
  %v247 = vsub.s32 0, %v246
  %v248 = vrot.slane %v243, %v247
  %v250 = vadd.f32 %v227, %v248
  %v251 = vadd.f32 %v228, %v248
  %v252 = vadd.f32 %v229, %v248
  %v253 = vadd.f32 %v230, %v248
  %v254 = vadd.f32 %v231, %v248
  %v255 = vadd.f32 %v232, %v248
  %v256 = vadd.f32 %v233, %v248
  %v257 = vadd.f32 %v234, %v248
  %v258 = vadd.f32 %v235, %v248
  %v259 = vadd.f32 %v236, %v248
  %v260 = vadd.f32 %v237, %v248
  %v261 = vadd.f32 %v238, %v248
  %v262 = vadd.f32 %v239, %v248
  %v263 = vadd.f32 %v240, %v248
  %v264 = vadd.f32 %v241, %v248
  %v265 = vadd.f32 %v242, %v248
  %vm266 = vcmask 64512
  %267 = vst.msk [vmem:[%s4] sm:$0xff] %vm266, %v250
  %268 = vst.msk [vmem:[%s4 + $0x8] sm:$0xff] %vm266, %v251
  %269 = vst.msk [vmem:[%s4 + $0x10] sm:$0xff] %vm266, %v252
  %270 = vst.msk [vmem:[%s4 + $0x18] sm:$0xff] %vm266, %v253
  %271 = vst.msk [vmem:[%s4 + $0x20] sm:$0xff] %vm266, %v254
  %272 = vst.msk [vmem:[%s4 + $0x28] sm:$0xff] %vm266, %v255
  %273 = vst.msk [vmem:[%s4 + $0x30] sm:$0xff] %vm266, %v256
  %274 = vst.msk [vmem:[%s4 + $0x38] sm:$0xff] %vm266, %v257
  %275 = vst.msk [vmem:[%s4 + $0x40] sm:$0xff] %vm266, %v258
  %276 = vst.msk [vmem:[%s4 + $0x48] sm:$0xff] %vm266, %v259
  %277 = vst.msk [vmem:[%s4 + $0x50] sm:$0xff] %vm266, %v260
  %278 = vst.msk [vmem:[%s4 + $0x58] sm:$0xff] %vm266, %v261
  %279 = vst.msk [vmem:[%s4 + $0x60] sm:$0xff] %vm266, %v262
  %280 = vst.msk [vmem:[%s4 + $0x68] sm:$0xff] %vm266, %v263
  %281 = vst.msk [vmem:[%s4 + $0x70] sm:$0xff] %vm266, %v264
  %282 = vst.msk [vmem:[%s4 + $0x78] sm:$0xff] %vm266, %v265
  // Predicated region
  $region18: #{downsample_forward.3} parent=0 // pred_check
    _
  $region19: #{downsample_forward.3} parent=0 // pred_check_branch
    %284 = sbr.rel (0) target = $region21
  $region20: #{downsample_forward.3} parent=0 // pred_region
    _
  $region21: #{downsample_forward.3} parent=0 // pred_fallthru
    _
  // Predicated region
  $region22: #{downsample_forward.3} parent=0 // pred_check
    _
  $region23: #{downsample_forward.3} parent=0 // pred_check_branch
    %286 = sbr.rel (0) target = $region25
  $region24: #{downsample_forward.3} parent=0 // pred_region
    _
  $region25: #{downsample_forward.3} parent=0 // pred_fallthru
    _

</llo_original>
